<compile_context>
chip_gen: v6e
topology: v6e:2x2x1
jax: 0.10.0
libtpu: 0.0.40
codegen_flags: <defaults>
</compile_context>

<pallas_src>
import functools

import jax
import jax.numpy as jnp
import numpy as np
from jax import lax
from jax.experimental import pallas as pl
from jax.experimental.pallas import tpu as pltpu

_CHUNK = 64  # packed rows per in-kernel sub-chunk (bounds vreg live ranges)


def _round_up(x, m):
    return ((x + m - 1) // m) * m


def _shrink(x, theta):
    # Literal PyTorch form: sign(x) * relu(|x| - theta).  Valid for theta of
    # either sign; written with compares/selects so it lowers cleanly on the VPU.
    mag = jnp.maximum(jnp.abs(x) - theta, 0.0)
    sgn = jnp.where(x > 0.0, 1.0, jnp.where(x < 0.0, -1.0, 0.0)).astype(x.dtype)
    return sgn * mag


def _detect_num_tensorcores():
    """Best-effort TensorCores-per-chip (v7x has 2; v5e/v6e have 1)."""
    try:
        dev = jax.devices()[0]
        kind = (getattr(dev, "device_kind", "") or "").lower()
        if "v7" in kind:
            return 2
        nc = getattr(dev, "num_cores", None)
        return int(nc) if nc else 1
    except Exception:
        return 1


def _pick_tiles(mg, desired, ncores):
    """Pick (tile_rows, chunk_rows) in packed-row units.

    Invariants: tile == mg (single full-extent block, always a legal block
    shape) or tile is a multiple of 8 that is <= mg (ragged last grid step is
    handled by Pallas); tile is always a multiple of chunk."""
    desired = max(int(desired), 8)

    if ncores >= 2 and mg >= 16:
        # v7x: give both TensorCores work.
        desired = min(desired, pl.cdiv(mg, 2))

    if desired >= mg:
        t = mg                       # single block covering the full extent
    else:
        t = max((min(desired, mg) // 8) * 8, 8)

    if t > _CHUNK and t % _CHUNK == 0:
        chunk = _CHUNK
    elif t > 2 * _CHUNK:
        t = (t // _CHUNK) * _CHUNK   # keep tile % chunk == 0
        chunk = _CHUNK
    else:
        chunk = t

    if ncores >= 2 and mg > t:
        # Prefer an even step count so both TensorCores finish together.
        while t > chunk and pl.cdiv(mg, t) % 2 != 0:
            t -= chunk

    return t, chunk


def _lista_kernel(theta_ref,   # SMEM (depth,)            f32
                  x_ref,       # VMEM (t, r*K)            input dtype
                  wblk_ref,    # VMEM (r*K, depth*r*D)    bf16/f32 (W_e kron-packed)
                  bblk_ref,    # VMEM (1, depth*r*D)      f32
                  sblk_ref,    # VMEM (s_len, r*D, r*D)   bf16/f32 (S kron-packed)
                  sbblk_ref,   # VMEM (s_len, 1, r*D)     f32
                  out_ref,     # VMEM (t, r*D)
                  *, depth, rD, chunk, compute_dtype):
    rows = x_ref.shape[0]
    nchunks = rows // chunk

    def stage(x):
        # One wide MXU push covers every W_e stage; f32 accumulate + f32 bias.
        pre = (jnp.dot(x.astype(compute_dtype), wblk_ref[...],
                       preferred_element_type=jnp.float32) + bblk_ref[...])
        z = _shrink(pre[:, :rD], theta_ref[0])
        for i in range(depth - 1):
            # 128-lane-aligned static slice (kron-packed layout) + 128x128 MXU tile.
            c = (pre[:, (i + 1) * rD:(i + 2) * rD]
                 + jnp.dot(z.astype(compute_dtype), sblk_ref[i],
                           preferred_element_type=jnp.float32)
                 + sbblk_ref[i])
            z = _shrink(c, theta_ref[i + 1])
        return z.astype(out_ref.dtype)

    if nchunks <= 1:
        out_ref[...] = stage(x_ref[...])
    else:
        # Sub-chunk the tile so pre/z/c live ranges fit the 64-vreg file while
        # the grid tile stays large (amortizes ~0.35us per grid step).
        def body(ci, carry):
            off = pl.multiple_of(ci * chunk, chunk)
            out_ref[pl.ds(off, chunk), :] = stage(x_ref[pl.ds(off, chunk), :])
            return carry

        lax.fori_loop(0, nchunks, body, 0, unroll=True)


def lista_embed_forward(patches, we_w, we_b, s_w, s_b, theta, *,
                        tm=1024, use_bf16=True, num_tensorcores=None):
    """patches: (B, N, K).  we_w: (depth, K, D) pre-transposed (y = x @ W),
    we_b: (depth, D), s_w: (depth-1, D, D) pre-transposed, s_b: (depth-1, D),
    theta: (depth,).  Returns (B, N, D).

    Passing `patches` already in bf16 halves the dominant HBM stream; the
    kernel casts whatever dtype arrives to the MXU compute dtype."""
    B, N, K = patches.shape
    depth, K_, D = we_w.shape
    assert K_ == K
    M = B * N
    compute_dtype = jnp.bfloat16 if use_bf16 else jnp.float32
    out_dtype = patches.dtype

    if num_tensorcores is None:
        num_tensorcores = _detect_num_tensorcores()

    # ---- Lane packing: r rows per 128-lane group (kron trick).
    r = 128 // D if (0 < D <= 128 and 128 % D == 0) else 1
    if r > 1 and M % r != 0:
        r = 1                      # rare fallback; stays pad-free
    rK, rD = r * K, r * D
    Mg = M // r                    # rows in packed space

    x2d = patches.reshape(M, K)
    if r > 1:
        x2d = x2d.reshape(Mg, rK)  # free reshape of contiguous rows

    # ---- Fold + kron-pack the (tiny) weights.
    def kron_r(w):
        return w if r == 1 else jnp.kron(jnp.eye(r, dtype=w.dtype), w)

    w_blk = jnp.concatenate([kron_r(we_w[i]) for i in range(depth)],
                            axis=1).astype(compute_dtype)            # (rK, depth*rD)
    b_blk = jnp.concatenate([jnp.tile(we_b[i], r) for i in range(depth)]
                            ).reshape(1, depth * rD).astype(jnp.float32)

    s_len = max(depth - 1, 1)
    if depth > 1:
        s_w_blk = jnp.stack([kron_r(s_w[i]) for i in range(depth - 1)]
                            ).astype(compute_dtype)                   # (s_len, rD, rD)
        s_b_blk = jnp.stack([jnp.tile(s_b[i], r) for i in range(depth - 1)]
                            )[:, None, :].astype(jnp.float32)         # (s_len, 1, rD)
    else:
        s_w_blk = jnp.zeros((1, rD, rD), compute_dtype)
        s_b_blk = jnp.zeros((1, 1, rD), jnp.float32)

    # ---- Tile / chunk heuristic (packed-row units); pad-free cdiv grid.
    t, chunk = _pick_tiles(Mg, max(1, int(tm)) // max(r, 1), num_tensorcores)
    steps = pl.cdiv(Mg, t)

    # ---- VMEM budget from the actual tile footprint (BlockSpec double-buffers
    #      everything); slack for the in-kernel f32 pre/z/c temporaries.
    lane = 128
    xcols = _round_up(rK, lane)
    pcols = _round_up(depth * rD, lane)
    ocols = _round_up(rD, lane)
    in_b = np.dtype(x2d.dtype).itemsize
    out_b = np.dtype(out_dtype).itemsize
    w_b = np.dtype(compute_dtype).itemsize
    vmem_bytes = (2 * t * xcols * in_b
                  + 2 * t * ocols * out_b
                  + 2 * _round_up(rK, 8) * pcols * w_b
                  + 2 * 8 * pcols * 4
                  + 2 * s_len * _round_up(rD, 8) * ocols * w_b
                  + 2 * s_len * 8 * ocols * 4
                  + 4 * chunk * pcols * 4)
    # Cap well below v7x's 64 MiB physical VMEM to leave compiler headroom.
    vmem_limit = int(min(48 * 1024 * 1024, max(vmem_bytes, 8 * 1024 * 1024)))

    kernel = functools.partial(_lista_kernel, depth=depth, rD=rD, chunk=chunk,
                               compute_dtype=compute_dtype)

    out2d = pl.pallas_call(
        kernel,
        out_shape=jax.ShapeDtypeStruct((Mg, rD), out_dtype),
        grid=(steps,),
        in_specs=[
            # theta: tiny scalar table -> SMEM, whole array.
            pl.BlockSpec(memory_space=pltpu.MemorySpace.SMEM),
            # packed patch rows: tile over rows, full row-group on lanes.
            pl.BlockSpec((t, rK), lambda i: (i, 0)),
            # constant-index weights (resident every step).
            pl.BlockSpec((rK, depth * rD), lambda i: (0, 0)),
            pl.BlockSpec((1, depth * rD), lambda i: (0, 0)),
            pl.BlockSpec((s_len, rD, rD), lambda i: (0, 0, 0)),
            pl.BlockSpec((s_len, 1, rD), lambda i: (0, 0, 0)),
        ],
        out_specs=pl.BlockSpec((t, rD), lambda i: (i, 0)),
        compiler_params=pltpu.CompilerParams(
            dimension_semantics=("parallel",),
            vmem_limit_bytes=vmem_limit),
    )(theta.astype(jnp.float32), x2d, w_blk, b_blk, s_w_blk, s_b_blk)

    # (Mg, r*D) row-major == (M, D) row-major: free reshape, no slice needed.
    return out2d.reshape(B, N, D)


def lista_embed_reference(patches, we_w, we_b, s_w, s_b, theta, *,
                          compute_dtype=jnp.float32):
    """Pure-JAX reference mirroring the PyTorch forward.  compute_dtype lets us
    mirror the kernel's bf16-input / f32-accumulate matmuls for tight checks."""
    depth = we_w.shape[0]

    def lin(xc, w, b):
        return jnp.einsum("...k,kd->...d", xc.astype(compute_dtype),
                          w.astype(compute_dtype),
                          preferred_element_type=jnp.float32) + b

    z = _shrink(lin(patches, we_w[0], we_b[0]), theta[0])
    for i in range(depth - 1):
        c = lin(patches, we_w[i + 1], we_b[i + 1]) + lin(z, s_w[i], s_b[i])
        z = _shrink(c, theta[i + 1])
    return z


if __name__ == "__main__":
    # Module hyperparameters (small, consistent with the PyTorch module).
    img_size, patch_size, in_chans, embed_dim, depth = 16, 4, 3, 32, 3
    B = 2
    num_patches = (img_size // patch_size) ** 2          # 16
    patch_dim = patch_size * patch_size * in_chans       # 48

    key = jax.random.PRNGKey(0)
    k_x, k_we, k_web, k_s, k_sb, k_x2, k_x3 = jax.random.split(key, 7)

    bound_we = 1.0 / np.sqrt(patch_dim)
    bound_s = 1.0 / np.sqrt(embed_dim)
    # Weights stored pre-transposed: y = x @ W (W has shape (in, out)).
    we_w = jax.random.uniform(k_we, (depth, patch_dim, embed_dim),
                              jnp.float32, -bound_we, bound_we)
    we_b = jax.random.uniform(k_web, (depth, embed_dim),
                              jnp.float32, -bound_we, bound_we)
    s_w = jax.random.uniform(k_s, (depth - 1, embed_dim, embed_dim),
                             jnp.float32, -bound_s, bound_s)
    s_b = jax.random.uniform(k_sb, (depth - 1, embed_dim),
                             jnp.float32, -bound_s, bound_s)
    theta = jnp.full((depth,), 0.05, dtype=jnp.float32)  # learned; kernel also
                                                          # handles negative theta

    patches = jax.random.normal(k_x, (B, num_patches, patch_dim), jnp.float32)

    out = jax.block_until_ready(
        lista_embed_forward(patches, we_w, we_b, s_w, s_b, theta))

    # (a) Tight check vs a numerics-matched reference (bf16 MXU inputs, f32 acc).
    ref_matched = lista_embed_reference(patches, we_w, we_b, s_w, s_b, theta,
                                        compute_dtype=jnp.bfloat16)
    np.testing.assert_allclose(np.asarray(out), np.asarray(ref_matched),
                               rtol=2e-3, atol=2e-3)
    # (b) Loose check vs the full-f32 PyTorch-semantics reference.
    ref_f32 = lista_embed_reference(patches, we_w, we_b, s_w, s_b, theta,
                                    compute_dtype=jnp.float32)
    np.testing.assert_allclose(np.asarray(out), np.asarray(ref_f32),
                               rtol=5e-2, atol=5e-2)

    # (c) Ragged, multi-step grid (rows % tile != 0) on the lane-packed path —
    #     confirms the pad-free edge handling flagged by the perf review.
    patches2 = jax.random.normal(k_x2, (3, 20, patch_dim), jnp.float32)
    out2 = jax.block_until_ready(
        lista_embed_forward(patches2, we_w, we_b, s_w, s_b, theta, tm=32))
    ref2 = lista_embed_reference(patches2, we_w, we_b, s_w, s_b, theta,
                                 compute_dtype=jnp.bfloat16)
    np.testing.assert_allclose(np.asarray(out2), np.asarray(ref2),
                               rtol=2e-3, atol=2e-3)

    # (d) M not divisible by the lane-pack factor r=4 — exercises the r=1 fallback.
    patches3 = jax.random.normal(k_x3, (1, 10, patch_dim), jnp.float32)
    out3 = jax.block_until_ready(
        lista_embed_forward(patches3, we_w, we_b, s_w, s_b, theta))
    ref3 = lista_embed_reference(patches3, we_w, we_b, s_w, s_b, theta,
                                 compute_dtype=jnp.bfloat16)
    np.testing.assert_allclose(np.asarray(out3), np.asarray(ref3),
                               rtol=2e-3, atol=2e-3)

    print("KERNEL_OK")
</pallas_src>

<mosaic_0001>
module attributes {stable_mosaic.version = 11 : i64} {
  func.func @_lista_kernel(%arg0: i32, %arg1: memref<3xf32, #tpu.memory_space<smem>>, %arg2: memref<8x192xf32, #tpu.memory_space<vmem>>, %arg3: memref<192x384xbf16, #tpu.memory_space<vmem>>, %arg4: memref<1x384xf32, #tpu.memory_space<vmem>>, %arg5: memref<2x128x128xbf16, #tpu.memory_space<vmem>>, %arg6: memref<2x1x128xf32, #tpu.memory_space<vmem>>, %arg7: memref<8x128xf32, #tpu.memory_space<vmem>>) attributes {dimension_semantics = [#tpu.dimension_semantics<parallel>], iteration_bounds = array<i64: 1>, scalar_prefetch = 0 : i64, scratch_operands = 0 : i64, tpu.core_type = #tpu.core_type<tc>, window_params = [{transform_indices = @transform_0, window_bounds = array<i64: 3>}, {transform_indices = @transform_1, window_bounds = array<i64: 8, 192>}, {pipeline_mode = #tpu.pipeline_mode<synchronous>, transform_indices = @transform_2, window_bounds = array<i64: 192, 384>}, {pipeline_mode = #tpu.pipeline_mode<synchronous>, transform_indices = @transform_3, window_bounds = array<i64: 1, 384>}, {pipeline_mode = #tpu.pipeline_mode<synchronous>, transform_indices = @transform_4, window_bounds = array<i64: 2, 128, 128>}, {pipeline_mode = #tpu.pipeline_mode<synchronous>, transform_indices = @transform_5, window_bounds = array<i64: 2, 1, 128>}, {transform_indices = @transform_6, window_bounds = array<i64: 8, 128>}]} {
    %c0 = arith.constant 0 : index
    %c0_0 = arith.constant 0 : index
    %0 = vector.load %arg2[%c0, %c0_0] : memref<8x192xf32, #tpu.memory_space<vmem>>, vector<8x192xf32>
    %1 = arith.truncf %0 : vector<8x192xf32> to vector<8x192xbf16>
    %c0_1 = arith.constant 0 : index
    %c0_2 = arith.constant 0 : index
    %2 = vector.load %arg3[%c0_1, %c0_2] : memref<192x384xbf16, #tpu.memory_space<vmem>>, vector<192x384xbf16>
    %cst = arith.constant dense<0.000000e+00> : vector<8x384xf32>
    %3 = tpu.matmul %1, %2, %cst {dimension_numbers = #tpu.dot_dimension_numbers<[1], [0], [0], [1], [0, 0, 1, 1], [], []>} : vector<8x192xbf16>, vector<192x384xbf16>, vector<8x384xf32> -> vector<8x384xf32>
    %c0_3 = arith.constant 0 : index
    %c0_4 = arith.constant 0 : index
    %4 = vector.load %arg4[%c0_3, %c0_4] : memref<1x384xf32, #tpu.memory_space<vmem>>, vector<1x384xf32>
    %5 = vector.broadcast %4 : vector<1x384xf32> to vector<8x384xf32>
    %6 = arith.addf %3, %5 : vector<8x384xf32>
    %7 = vector.extract_strided_slice %6 {offsets = [0, 0], sizes = [8, 128], strides = [1, 1]} : vector<8x384xf32> to vector<8x128xf32>
    %c0_5 = arith.constant 0 : index
    %8 = memref.load %arg1[%c0_5] : memref<3xf32, #tpu.memory_space<smem>>
    %9 = math.absf %7 : vector<8x128xf32>
    %10 = vector.broadcast %8 : f32 to vector<8x128xf32>
    %11 = arith.subf %9, %10 : vector<8x128xf32>
    %cst_6 = arith.constant 0.000000e+00 : f32
    %12 = vector.broadcast %cst_6 : f32 to vector<8x128xf32>
    %13 = arith.maximumf %11, %12 : vector<8x128xf32>
    %cst_7 = arith.constant 0.000000e+00 : f32
    %14 = vector.broadcast %cst_7 : f32 to vector<8x128xf32>
    %15 = arith.cmpf ogt, %7, %14 : vector<8x128xf32>
    %cst_8 = arith.constant 0.000000e+00 : f32
    %16 = vector.broadcast %cst_8 : f32 to vector<8x128xf32>
    %17 = arith.cmpf olt, %7, %16 : vector<8x128xf32>
    %cst_9 = arith.constant -1.000000e+00 : f32
    %cst_10 = arith.constant 0.000000e+00 : f32
    %18 = vector.broadcast %cst_9 : f32 to vector<8x128xf32>
    %19 = vector.broadcast %cst_10 : f32 to vector<8x128xf32>
    %20 = arith.select %17, %18, %19 : vector<8x128xi1>, vector<8x128xf32>
    %cst_11 = arith.constant 1.000000e+00 : f32
    %21 = vector.broadcast %cst_11 : f32 to vector<8x128xf32>
    %22 = arith.select %15, %21, %20 : vector<8x128xi1>, vector<8x128xf32>
    %23 = arith.mulf %22, %13 : vector<8x128xf32>
    %24 = vector.extract_strided_slice %6 {offsets = [0, 128], sizes = [8, 128], strides = [1, 1]} : vector<8x384xf32> to vector<8x128xf32>
    %25 = arith.truncf %23 : vector<8x128xf32> to vector<8x128xbf16>
    %c0_12 = arith.constant 0 : index
    %c0_13 = arith.constant 0 : index
    %c0_14 = arith.constant 0 : index
    %26 = vector.load %arg5[%c0_12, %c0_13, %c0_14] : memref<2x128x128xbf16, #tpu.memory_space<vmem>>, vector<1x128x128xbf16>
    %27 = vector.shape_cast %26 : vector<1x128x128xbf16> to vector<128x128xbf16>
    %cst_15 = arith.constant dense<0.000000e+00> : vector<8x128xf32>
    %28 = tpu.matmul %25, %27, %cst_15 {dimension_numbers = #tpu.dot_dimension_numbers<[1], [0], [0], [1], [0, 0, 1, 1], [], []>} : vector<8x128xbf16>, vector<128x128xbf16>, vector<8x128xf32> -> vector<8x128xf32>
    %29 = arith.addf %24, %28 : vector<8x128xf32>
    %c0_16 = arith.constant 0 : index
    %c0_17 = arith.constant 0 : index
    %c0_18 = arith.constant 0 : index
    %30 = vector.load %arg6[%c0_16, %c0_17, %c0_18] : memref<2x1x128xf32, #tpu.memory_space<vmem>>, vector<1x1x128xf32>
    %31 = vector.shape_cast %30 : vector<1x1x128xf32> to vector<1x128xf32>
    %32 = vector.broadcast %31 : vector<1x128xf32> to vector<8x128xf32>
    %33 = arith.addf %29, %32 : vector<8x128xf32>
    %c1 = arith.constant 1 : index
    %34 = memref.load %arg1[%c1] : memref<3xf32, #tpu.memory_space<smem>>
    %35 = math.absf %33 : vector<8x128xf32>
    %36 = vector.broadcast %34 : f32 to vector<8x128xf32>
    %37 = arith.subf %35, %36 : vector<8x128xf32>
    %cst_19 = arith.constant 0.000000e+00 : f32
    %38 = vector.broadcast %cst_19 : f32 to vector<8x128xf32>
    %39 = arith.maximumf %37, %38 : vector<8x128xf32>
    %cst_20 = arith.constant 0.000000e+00 : f32
    %40 = vector.broadcast %cst_20 : f32 to vector<8x128xf32>
    %41 = arith.cmpf ogt, %33, %40 : vector<8x128xf32>
    %cst_21 = arith.constant 0.000000e+00 : f32
    %42 = vector.broadcast %cst_21 : f32 to vector<8x128xf32>
    %43 = arith.cmpf olt, %33, %42 : vector<8x128xf32>
    %cst_22 = arith.constant -1.000000e+00 : f32
    %cst_23 = arith.constant 0.000000e+00 : f32
    %44 = vector.broadcast %cst_22 : f32 to vector<8x128xf32>
    %45 = vector.broadcast %cst_23 : f32 to vector<8x128xf32>
    %46 = arith.select %43, %44, %45 : vector<8x128xi1>, vector<8x128xf32>
    %cst_24 = arith.constant 1.000000e+00 : f32
    %47 = vector.broadcast %cst_24 : f32 to vector<8x128xf32>
    %48 = arith.select %41, %47, %46 : vector<8x128xi1>, vector<8x128xf32>
    %49 = arith.mulf %48, %39 : vector<8x128xf32>
    %50 = vector.extract_strided_slice %6 {offsets = [0, 256], sizes = [8, 128], strides = [1, 1]} : vector<8x384xf32> to vector<8x128xf32>
    %51 = arith.truncf %49 : vector<8x128xf32> to vector<8x128xbf16>
    %c1_25 = arith.constant 1 : index
    %c0_26 = arith.constant 0 : index
    %c0_27 = arith.constant 0 : index
    %52 = vector.load %arg5[%c1_25, %c0_26, %c0_27] : memref<2x128x128xbf16, #tpu.memory_space<vmem>>, vector<1x128x128xbf16>
    %53 = vector.shape_cast %52 : vector<1x128x128xbf16> to vector<128x128xbf16>
    %cst_28 = arith.constant dense<0.000000e+00> : vector<8x128xf32>
    %54 = tpu.matmul %51, %53, %cst_28 {dimension_numbers = #tpu.dot_dimension_numbers<[1], [0], [0], [1], [0, 0, 1, 1], [], []>} : vector<8x128xbf16>, vector<128x128xbf16>, vector<8x128xf32> -> vector<8x128xf32>
    %55 = arith.addf %50, %54 : vector<8x128xf32>
    %c1_29 = arith.constant 1 : index
    %c0_30 = arith.constant 0 : index
    %c0_31 = arith.constant 0 : index
    %56 = vector.load %arg6[%c1_29, %c0_30, %c0_31] : memref<2x1x128xf32, #tpu.memory_space<vmem>>, vector<1x1x128xf32>
    %57 = vector.shape_cast %56 : vector<1x1x128xf32> to vector<1x128xf32>
    %58 = vector.broadcast %57 : vector<1x128xf32> to vector<8x128xf32>
    %59 = arith.addf %55, %58 : vector<8x128xf32>
    %c2 = arith.constant 2 : index
    %60 = memref.load %arg1[%c2] : memref<3xf32, #tpu.memory_space<smem>>
    %61 = math.absf %59 : vector<8x128xf32>
    %62 = vector.broadcast %60 : f32 to vector<8x128xf32>
    %63 = arith.subf %61, %62 : vector<8x128xf32>
    %cst_32 = arith.constant 0.000000e+00 : f32
    %64 = vector.broadcast %cst_32 : f32 to vector<8x128xf32>
    %65 = arith.maximumf %63, %64 : vector<8x128xf32>
    %cst_33 = arith.constant 0.000000e+00 : f32
    %66 = vector.broadcast %cst_33 : f32 to vector<8x128xf32>
    %67 = arith.cmpf ogt, %59, %66 : vector<8x128xf32>
    %cst_34 = arith.constant 0.000000e+00 : f32
    %68 = vector.broadcast %cst_34 : f32 to vector<8x128xf32>
    %69 = arith.cmpf olt, %59, %68 : vector<8x128xf32>
    %cst_35 = arith.constant -1.000000e+00 : f32
    %cst_36 = arith.constant 0.000000e+00 : f32
    %70 = vector.broadcast %cst_35 : f32 to vector<8x128xf32>
    %71 = vector.broadcast %cst_36 : f32 to vector<8x128xf32>
    %72 = arith.select %69, %70, %71 : vector<8x128xi1>, vector<8x128xf32>
    %cst_37 = arith.constant 1.000000e+00 : f32
    %73 = vector.broadcast %cst_37 : f32 to vector<8x128xf32>
    %74 = arith.select %67, %73, %72 : vector<8x128xi1>, vector<8x128xf32>
    %75 = arith.mulf %74, %65 : vector<8x128xf32>
    %c0_38 = arith.constant 0 : index
    %c0_39 = arith.constant 0 : index
    %76 = vector.load %arg7[%c0_38, %c0_39] : memref<8x128xf32, #tpu.memory_space<vmem>>, vector<8x128xf32>
    tpu.vector_store %arg7[%c0_38, %c0_39], %75 {strides = array<i32>} : memref<8x128xf32, #tpu.memory_space<vmem>>, vector<8x128xf32>,
    return
  }
  func.func @transform_0(%arg0: i32) -> i32 {
    %c0_i32 = arith.constant 0 : i32
    %c0_i32_0 = arith.constant 0 : i32
    return %c0_i32 : i32
  }
  func.func @transform_1(%arg0: i32) -> (i32, i32) {
    %c0_i32 = arith.constant 0 : i32
    %c0_i32_0 = arith.constant 0 : i32
    return %arg0, %c0_i32 : i32, i32
  }
  func.func @transform_2(%arg0: i32) -> (i32, i32) {
    %c0_i32 = arith.constant 0 : i32
    %c0_i32_0 = arith.constant 0 : i32
    %c0_i32_1 = arith.constant 0 : i32
    return %c0_i32, %c0_i32_0 : i32, i32
  }
  func.func @transform_3(%arg0: i32) -> (i32, i32) {
    %c0_i32 = arith.constant 0 : i32
    %c0_i32_0 = arith.constant 0 : i32
    %c0_i32_1 = arith.constant 0 : i32
    return %c0_i32, %c0_i32_0 : i32, i32
  }
  func.func @transform_4(%arg0: i32) -> (i32, i32, i32) {
    %c0_i32 = arith.constant 0 : i32
    %c0_i32_0 = arith.constant 0 : i32
    %c0_i32_1 = arith.constant 0 : i32
    %c0_i32_2 = arith.constant 0 : i32
    return %c0_i32, %c0_i32_0, %c0_i32_1 : i32, i32, i32
  }
  func.func @transform_5(%arg0: i32) -> (i32, i32, i32) {
    %c0_i32 = arith.constant 0 : i32
    %c0_i32_0 = arith.constant 0 : i32
    %c0_i32_1 = arith.constant 0 : i32
    %c0_i32_2 = arith.constant 0 : i32
    return %c0_i32, %c0_i32_0, %c0_i32_1 : i32, i32, i32
  }
  func.func @transform_6(%arg0: i32) -> (i32, i32) {
    %c0_i32 = arith.constant 0 : i32
    %c0_i32_0 = arith.constant 0 : i32
    return %arg0, %c0_i32 : i32, i32
  }
}

</mosaic_0001>

<llo_original>
// kernel: tpu_custom_call.1
$region0: #{tpu_custom_call.1}
  #allocation0 [shape = 'u32[]', space=smem, size = 0x4, offset = 0x4, fixed_abs, tag = 'smem constant byte address 0x4 - core index']
  #allocation1 [shape = 'u32[144,128]{1,0:T(1,128)}', space=vmem, size = 0x12000, scoped, tag = 'internal scratch']
  %s0 = inlined_call_operand.hbm [shape: f32[3], index: 0, kind: input, shape index: {}]
  %s1 = inlined_call_operand.hbm [shape: f32[8,192], index: 1, kind: input, shape index: {}]
  %s2 = inlined_call_operand.hbm [shape: bf16[192,384], index: 2, kind: input, shape index: {}]
  %s3 = inlined_call_operand.vmem [shape: f32[1,384], index: 3, kind: input, shape index: {}]
  %s4 = inlined_call_operand.hbm [shape: bf16[2,128,128], index: 4, kind: input, shape index: {}]
  %s5 = inlined_call_operand.vmem [shape: f32[2,1,128], index: 5, kind: input, shape index: {}]
  %s6 = inlined_call_operand.hbm [shape: f32[8,128], index: 6, kind: output, shape index: {}]
  %s7 = sld [smem:[#allocation0]]
  $region50: #{tpu_custom_call.1} parent=0
    _
  %s9 = ssub.s32 1, %s7
  %s10 = scalar_select 0, %s9, %s7
  $region1: #{tpu_custom_call.1} parent=0
    #allocation2 [shape = 'u8[512]{0}', space=smem, size = 0x200, scoped, tag = 'input window, operand 0, single buffered']
    #allocation3 [shape = 's32[1]{0}', space=sflag, size = 0x4, scoped, tag = 'scoped memory for tpu_custom_call.1']
    #allocation4 [shape = 's32[1]{0}', space=sflag, size = 0x4, scoped, tag = 'scoped memory for tpu_custom_call.1']
    #allocation5 [shape = 's32[1]{0}', space=sflag, size = 0x4, scoped, tag = 'scoped memory for tpu_custom_call.1']
    #allocation6 [shape = 'u8[8192]{0}', space=vmem, size = 0x2000, scoped, tag = 'input window, operand 1, single buffered']
    #allocation7 [shape = 'u8[147456]{0}', space=vmem, size = 0x24000, scoped, tag = 'input window, operand 2, single buffered']
    #allocation8 [shape = 's32[1]{0}', space=sflag, size = 0x4, scoped, tag = 'scoped memory for tpu_custom_call.1']
    #allocation9 [shape = 'u8[65536]{0}', space=vmem, size = 0x10000, scoped, tag = 'input window, operand 4, single buffered']
    #allocation10 [shape = 'u8[4096]{0}', space=vmem, size = 0x1000, scoped, tag = 'output window, operand 0, single buffered']
    %11 = vsyncpa [#allocation5], 0
    %12 = vsyncpa [#allocation3], 0
    %13 = vsyncpa [#allocation8], 0
    %14 = vsyncpa [#allocation4], 0
    // Predicated region
    $region2: #{tpu_custom_call.1} parent=1 // pred_check
      _
    $region3: #{tpu_custom_call.1} parent=1 // pred_check_branch
      %16 = sbr.rel (0) target = $region5
    $region4: #{tpu_custom_call.1} parent=1 // pred_region
      %s18 = ssub.s32 16, 16
      %19 = vsyncadd [#allocation5], %s18
      %22 = dma.hbm_to_smem %s0, 16, [#allocation2], [#allocation5]
    $region5: #{tpu_custom_call.1} parent=1 // pred_fallthru
      _
    // Predicated region
    $region6: #{tpu_custom_call.1} parent=1 // pred_check
      _
    $region7: #{tpu_custom_call.1} parent=1 // pred_check_branch
      %24 = sbr.rel (0) target = $region9
    $region8: #{tpu_custom_call.1} parent=1 // pred_region
      %s26 = ssub.s32 256, 256
      %27 = vsyncadd [#allocation3], %s26
      %s29 = sshll.u32 [#allocation6], 4
      %s30 = int_to_ptr.vmem [resolvable:$true] %s29
      %32 = dma.hbm_to_vmem [thread:$0]  %s1, 256, %s30, [#allocation3]
    $region9: #{tpu_custom_call.1} parent=1 // pred_fallthru
      _
    // Predicated region
    $region10: #{tpu_custom_call.1} parent=1 // pred_check
      _
    $region11: #{tpu_custom_call.1} parent=1 // pred_check_branch
      %34 = sbr.rel (0) target = $region13
    $region12: #{tpu_custom_call.1} parent=1 // pred_region
      %s36 = ssub.s32 4608, 4608
      %37 = vsyncadd [#allocation8], %s36
      %s38 = sshll.u32 [#allocation7], 4
      %s39 = int_to_ptr.vmem [resolvable:$true] %s38
      %44 = dma.hbm_to_vmem [thread:$0]  %s2, 4608, %s39, [#allocation8], 192, 192, 12
    $region13: #{tpu_custom_call.1} parent=1 // pred_fallthru
      _
    // Predicated region
    $region14: #{tpu_custom_call.1} parent=1 // pred_check
      _
    $region15: #{tpu_custom_call.1} parent=1 // pred_check_branch
      %46 = sbr.rel (0) target = $region17
    $region16: #{tpu_custom_call.1} parent=1 // pred_region
      _
    $region17: #{tpu_custom_call.1} parent=1 // pred_fallthru
      _
    // Predicated region
    $region18: #{tpu_custom_call.1} parent=1 // pred_check
      _
    $region19: #{tpu_custom_call.1} parent=1 // pred_check_branch
      %48 = sbr.rel (0) target = $region21
    $region20: #{tpu_custom_call.1} parent=1 // pred_region
      %s50 = ssub.s32 2048, 2048
      %51 = vsyncadd [#allocation8], %s50
      %s52 = sshll.u32 [#allocation9], 4
      %s53 = int_to_ptr.vmem [resolvable:$true] %s52
      %58 = dma.hbm_to_vmem [thread:$0]  %s4, 2048, %s53, [#allocation8], 64, 64, 4
    $region21: #{tpu_custom_call.1} parent=1 // pred_fallthru
      _
    // Predicated region
    $region22: #{tpu_custom_call.1} parent=1 // pred_check
      _
    $region23: #{tpu_custom_call.1} parent=1 // pred_check_branch
      %60 = sbr.rel (0) target = $region25
    $region24: #{tpu_custom_call.1} parent=1 // pred_region
      _
    $region25: #{tpu_custom_call.1} parent=1 // pred_fallthru
      _
    // Predicated region
    $region26: #{tpu_custom_call.1} parent=1 // pred_check
      _
    $region27: #{tpu_custom_call.1} parent=1 // pred_check_branch
      %62 = sbr.rel (0) target = $region29
    $region28: #{tpu_custom_call.1} parent=1 // pred_region
      %63 = dma.done [#allocation5], 16
    $region29: #{tpu_custom_call.1} parent=1 // pred_fallthru
      _
    // Predicated region
    $region30: #{tpu_custom_call.1} parent=1 // pred_check
      _
    $region31: #{tpu_custom_call.1} parent=1 // pred_check_branch
      %65 = sbr.rel (0) target = $region33
    $region32: #{tpu_custom_call.1} parent=1 // pred_region
      %66 = dma.done [#allocation3], 256
    $region33: #{tpu_custom_call.1} parent=1 // pred_fallthru
      _
    // Predicated region
    $region34: #{tpu_custom_call.1} parent=1 // pred_check
      _
    $region35: #{tpu_custom_call.1} parent=1 // pred_check_branch
      %68 = sbr.rel (0) target = $region37
    $region36: #{tpu_custom_call.1} parent=1 // pred_region
      %69 = dma.done [#allocation8], 4608
    $region37: #{tpu_custom_call.1} parent=1 // pred_fallthru
      _
    // Predicated region
    $region38: #{tpu_custom_call.1} parent=1 // pred_check
      _
    $region39: #{tpu_custom_call.1} parent=1 // pred_check_branch
      %71 = sbr.rel (0) target = $region41
    $region40: #{tpu_custom_call.1} parent=1 // pred_region
      %72 = dma.done [#allocation8], 2048
    $region41: #{tpu_custom_call.1} parent=1 // pred_fallthru
      _
    %73 = sfence
    %v75 = vld [vmem:[#allocation6] sm:$0xff]
    %v76 = vld [vmem:[#allocation6 + $0x8] sm:$0xff]
    %v77 = vpack.c.bf16 %v75, %v75
    %v78 = vpack.c.bf16 %v76, %v76
    %v79 = vld [vmem:[#allocation7] sm:$0xff]
    %v80 = vld [vmem:[#allocation7 + $0x8] sm:$0xf]
    %v81 = vld [vmem:[#allocation7 + $0xc] sm:$0xff]
    %v82 = vld [vmem:[#allocation7 + $0x14] sm:$0xf]
    %v83 = vld [vmem:[#allocation7 + $0x18] sm:$0xff]
    %v84 = vld [vmem:[#allocation7 + $0x20] sm:$0xf]
    %v85 = vld [vmem:[#allocation7 + $0x24] sm:$0xff]
    %v86 = vld [vmem:[#allocation7 + $0x2c] sm:$0xf]
    %v87 = vld [vmem:[#allocation7 + $0x30] sm:$0xff]
    %v88 = vld [vmem:[#allocation7 + $0x38] sm:$0xf]
    %v89 = vld [vmem:[#allocation7 + $0x3c] sm:$0xff]
    %v90 = vld [vmem:[#allocation7 + $0x44] sm:$0xf]
    %v91 = vld [vmem:[#allocation7 + $0x48] sm:$0xff]
    %v92 = vld [vmem:[#allocation7 + $0x50] sm:$0xf]
    %v93 = vld [vmem:[#allocation7 + $0x54] sm:$0xff]
    %v94 = vld [vmem:[#allocation7 + $0x5c] sm:$0xf]
    %v95 = vld [vmem:[#allocation7 + $0x60] sm:$0xff]
    %v96 = vld [vmem:[#allocation7 + $0x68] sm:$0xf]
    %v97 = vld [vmem:[#allocation7 + $0x6c] sm:$0xff]
    %v98 = vld [vmem:[#allocation7 + $0x74] sm:$0xf]
    %v99 = vld [vmem:[#allocation7 + $0x78] sm:$0xff]
    %v100 = vld [vmem:[#allocation7 + $0x80] sm:$0xf]
    %v101 = vld [vmem:[#allocation7 + $0x84] sm:$0xff]
    %v102 = vld [vmem:[#allocation7 + $0x8c] sm:$0xf]
    %v103 = vld [vmem:[#allocation7 + $0x90] sm:$0xff]
    %v104 = vld [vmem:[#allocation7 + $0x98] sm:$0xf]
    %v105 = vld [vmem:[#allocation7 + $0x9c] sm:$0xff]
    %v106 = vld [vmem:[#allocation7 + $0xa4] sm:$0xf]
    %v107 = vld [vmem:[#allocation7 + $0xa8] sm:$0xff]
    %v108 = vld [vmem:[#allocation7 + $0xb0] sm:$0xf]
    %v109 = vld [vmem:[#allocation7 + $0xb4] sm:$0xff]
    %v110 = vld [vmem:[#allocation7 + $0xbc] sm:$0xf]
    %v111 = vld [vmem:[#allocation7 + $0xc0] sm:$0xff]
    %v112 = vld [vmem:[#allocation7 + $0xc8] sm:$0xf]
    %v113 = vld [vmem:[#allocation7 + $0xcc] sm:$0xff]
    %v114 = vld [vmem:[#allocation7 + $0xd4] sm:$0xf]
    %v115 = vld [vmem:[#allocation7 + $0xd8] sm:$0xff]
    %v116 = vld [vmem:[#allocation7 + $0xe0] sm:$0xf]
    %v117 = vld [vmem:[#allocation7 + $0xe4] sm:$0xff]
    %v118 = vld [vmem:[#allocation7 + $0xec] sm:$0xf]
    %v119 = vld [vmem:[#allocation7 + $0xf0] sm:$0xff]
    %v120 = vld [vmem:[#allocation7 + $0xf8] sm:$0xf]
    %v121 = vld [vmem:[#allocation7 + $0xfc] sm:$0xff]
    %v122 = vld [vmem:[#allocation7 + $0x104] sm:$0xf]
    %v123 = vld [vmem:[#allocation7 + $0x108] sm:$0xff]
    %v124 = vld [vmem:[#allocation7 + $0x110] sm:$0xf]
    %v125 = vld [vmem:[#allocation7 + $0x114] sm:$0xff]
    %v126 = vld [vmem:[#allocation7 + $0x11c] sm:$0xf]
    %v127 = vld [vmem:[%s3] sm:$0x7]
    %v129 = vlaneseq
    %v130 = vshrl.u32 %v129, 7
    %v131 = vsub.s32 0, %v130
    %v132 = vrot.slane %v127, %v131
    %v133 = vlaneseq
    %v134 = vshrl.u32 %v133, 7
    %v135 = vsub.s32 1, %v134
    %v136 = vrot.slane %v127, %v135
    %v137 = vlaneseq
    %v138 = vshrl.u32 %v137, 7
    %v139 = vsub.s32 2, %v138
    %v140 = vrot.slane %v127, %v139
    %v192 = vunpack.c.l.b16 %v79
    %v193 = vunpack.c.h.b16 %v79
    %v194 = vunpack.c.l.b16 %v80
    %v195 = vunpack.c.l.b16 %v81
    %v196 = vunpack.c.h.b16 %v81
    %v197 = vunpack.c.l.b16 %v82
    %v198 = vunpack.c.l.b16 %v83
    %v199 = vunpack.c.h.b16 %v83
    %v200 = vunpack.c.l.b16 %v84
    %v201 = vunpack.c.l.b16 %v85
    %v202 = vunpack.c.h.b16 %v85
    %v203 = vunpack.c.l.b16 %v86
    %v204 = vunpack.c.l.b16 %v87
    %v205 = vunpack.c.h.b16 %v87
    %v206 = vunpack.c.l.b16 %v88
    %v207 = vunpack.c.l.b16 %v89
    %v208 = vunpack.c.h.b16 %v89
    %v209 = vunpack.c.l.b16 %v90
    %v210 = vunpack.c.l.b16 %v91
    %v211 = vunpack.c.h.b16 %v91
    %v212 = vunpack.c.l.b16 %v92
    %v213 = vunpack.c.l.b16 %v93
    %v214 = vunpack.c.h.b16 %v93
    %v215 = vunpack.c.l.b16 %v94
    %v216 = vunpack.c.l.b16 %v95
    %v217 = vunpack.c.h.b16 %v95
    %v218 = vunpack.c.l.b16 %v96
    %v219 = vunpack.c.l.b16 %v97
    %v220 = vunpack.c.h.b16 %v97
    %v221 = vunpack.c.l.b16 %v98
    %v222 = vunpack.c.l.b16 %v99
    %v223 = vunpack.c.h.b16 %v99
    %v224 = vunpack.c.l.b16 %v100
    %v225 = vunpack.c.l.b16 %v101
    %v226 = vunpack.c.h.b16 %v101
    %v227 = vunpack.c.l.b16 %v102
    %v228 = vunpack.c.l.b16 %v103
    %v229 = vunpack.c.h.b16 %v103
    %v230 = vunpack.c.l.b16 %v104
    %v231 = vunpack.c.l.b16 %v105
    %v232 = vunpack.c.h.b16 %v105
    %v233 = vunpack.c.l.b16 %v106
    %v234 = vunpack.c.l.b16 %v107
    %v235 = vunpack.c.h.b16 %v107
    %v236 = vunpack.c.l.b16 %v108
    %v237 = vunpack.c.l.b16 %v109
    %v238 = vunpack.c.h.b16 %v109
    %v239 = vunpack.c.l.b16 %v110
    %v240 = vunpack.c.l.b16 %v111
    %v241 = vunpack.c.h.b16 %v111
    %v242 = vunpack.c.l.b16 %v112
    %v243 = vunpack.c.l.b16 %v113
    %v244 = vunpack.c.h.b16 %v113
    %v245 = vunpack.c.l.b16 %v114
    %v246 = vunpack.c.l.b16 %v115
    %v247 = vunpack.c.h.b16 %v115
    %v248 = vunpack.c.l.b16 %v116
    %v249 = vunpack.c.l.b16 %v117
    %v250 = vunpack.c.h.b16 %v117
    %v251 = vunpack.c.l.b16 %v118
    %v252 = vunpack.c.l.b16 %v119
    %v253 = vunpack.c.h.b16 %v119
    %v254 = vunpack.c.l.b16 %v120
    %v255 = vunpack.c.l.b16 %v121
    %v256 = vunpack.c.h.b16 %v121
    %v257 = vunpack.c.l.b16 %v122
    %v258 = vunpack.c.l.b16 %v123
    %v259 = vunpack.c.h.b16 %v123
    %v260 = vunpack.c.l.b16 %v124
    %v261 = vunpack.c.l.b16 %v125
    %v262 = vunpack.c.h.b16 %v125
    %v263 = vunpack.c.l.b16 %v126
    %v264 = vpack.c.b16 %v195, %v192
    %v265 = vpack.c.b16 %v196, %v193
    %v266 = vpack.c.b16 %v197, %v194
    %v267 = vpack.c.b16 %v201, %v198
    %v268 = vpack.c.b16 %v202, %v199
    %v269 = vpack.c.b16 %v203, %v200
    %v270 = vpack.c.b16 %v207, %v204
    %v271 = vpack.c.b16 %v208, %v205
    %v272 = vpack.c.b16 %v209, %v206
    %v273 = vpack.c.b16 %v213, %v210
    %v274 = vpack.c.b16 %v214, %v211
    %v275 = vpack.c.b16 %v215, %v212
    %v276 = vpack.c.b16 %v219, %v216
    %v277 = vpack.c.b16 %v220, %v217
    %v278 = vpack.c.b16 %v221, %v218
    %v279 = vpack.c.b16 %v225, %v222
    %v280 = vpack.c.b16 %v226, %v223
    %v281 = vpack.c.b16 %v227, %v224
    %v282 = vpack.c.b16 %v231, %v228
    %v283 = vpack.c.b16 %v232, %v229
    %v284 = vpack.c.b16 %v233, %v230
    %v285 = vpack.c.b16 %v237, %v234
    %v286 = vpack.c.b16 %v238, %v235
    %v287 = vpack.c.b16 %v239, %v236
    %v288 = vpack.c.b16 %v243, %v240
    %v289 = vpack.c.b16 %v244, %v241
    %v290 = vpack.c.b16 %v245, %v242
    %v291 = vpack.c.b16 %v249, %v246
    %v292 = vpack.c.b16 %v250, %v247
    %v293 = vpack.c.b16 %v251, %v248
    %v294 = vpack.c.b16 %v255, %v252
    %v295 = vpack.c.b16 %v256, %v253
    %v296 = vpack.c.b16 %v257, %v254
    %v297 = vpack.c.b16 %v261, %v258
    %v298 = vpack.c.b16 %v262, %v259
    %v299 = vpack.c.b16 %v263, %v260
    %vm336 = vcmask 523264
    %v338 = vsel %vm336, %v78, 0
    %340 = vmatprep.subr.bf16.mxu0 %v286
    %341 = vmatpush1.bf16.msra.mxu0 %v285
    %342 = vmatprep.subr.bf16.mxu0 %v283
    %343 = vmatpush1.bf16.msra.mxu0 %v282
    %344 = vmatprep.subr.bf16.mxu0 %v280
    %345 = vmatpush1.bf16.msra.mxu0 %v279
    %346 = vmatprep.subr.bf16.mxu0 %v277
    %347 = vmatpush1.bf16.msra.mxu0 %v276
    %348 = vmatprep.subr.bf16.mxu0 %v274
    %349 = vmatpush1.bf16.msra.mxu0 %v273
    %350 = vmatprep.subr.bf16.mxu0 %v271
    %351 = vmatpush1.bf16.msra.mxu0 %v270
    %352 = vmatprep.subr.bf16.mxu0 %v268
    %353 = vmatpush1.bf16.msra.mxu0 %v267
    %354 = vmatprep.subr.bf16.mxu0 %v265
    %355 = vmatpush1.bf16.msra.mxu0 %v264
    %356 = vmatprep.subr.bf16.mxu0 0
    %357 = vmatpush2.bf16.msra.mxu0 0
    %358 = vmatprep.subr.bf16.mxu0 0
    %359 = vmatpush2.bf16.msra.mxu0 0
    %360 = vmatprep.subr.bf16.mxu0 0
    %361 = vmatpush2.bf16.msra.mxu0 0
    %362 = vmatprep.subr.bf16.mxu0 0
    %363 = vmatpush2.bf16.msra.mxu0 0
    %364 = vmatprep.subr.bf16.mxu0 %v298
    %365 = vmatpush2.bf16.msra.mxu0 %v297
    %366 = vmatprep.subr.bf16.mxu0 %v295
    %367 = vmatpush2.bf16.msra.mxu0 %v294
    %368 = vmatprep.subr.bf16.mxu0 %v292
    %369 = vmatpush2.bf16.msra.mxu0 %v291
    %370 = vmatprep.subr.bf16.mxu0 %v289
    %371 = vmatpush2.bf16.msra.mxu0 %v288
    %372 = vmatprep.mubr.bf16.mxu0 %v338
    %373 = vmatmul.mubr.bf16.gmra.mxu0 %v77
    %v374 = vpop.f32.mrf.mxu0
    %v375 = vadd.f32 %v132, %v374
    %v376 = vpop.f32.mrf.mxu0
    %v377 = vadd.f32 %v136, %v376
    %v378 = vpop.f32.mrf.mxu0
    %v379 = vpop.f32.mrf.mxu0
    %380 = vdwg.mxu0
    %381 = vmatprep.subr.bf16.mxu0 0
    %382 = vmatpush1.bf16.msra.mxu0 %v287
    %383 = vmatprep.subr.bf16.mxu0 0
    %384 = vmatpush1.bf16.msra.mxu0 %v284
    %385 = vmatprep.subr.bf16.mxu0 0
    %386 = vmatpush1.bf16.msra.mxu0 %v281
    %387 = vmatprep.subr.bf16.mxu0 0
    %388 = vmatpush1.bf16.msra.mxu0 %v278
    %389 = vmatprep.subr.bf16.mxu0 0
    %390 = vmatpush1.bf16.msra.mxu0 %v275
    %391 = vmatprep.subr.bf16.mxu0 0
    %392 = vmatpush1.bf16.msra.mxu0 %v272
    %393 = vmatprep.subr.bf16.mxu0 0
    %394 = vmatpush1.bf16.msra.mxu0 %v269
    %395 = vmatprep.subr.bf16.mxu0 0
    %396 = vmatpush1.bf16.msra.mxu0 %v266
    %397 = vmatprep.subr.bf16.mxu0 0
    %398 = vmatpush2.bf16.msra.mxu0 0
    %399 = vmatprep.subr.bf16.mxu0 0
    %400 = vmatpush2.bf16.msra.mxu0 0
    %401 = vmatprep.subr.bf16.mxu0 0
    %402 = vmatpush2.bf16.msra.mxu0 0
    %403 = vmatprep.subr.bf16.mxu0 0
    %404 = vmatpush2.bf16.msra.mxu0 0
    %405 = vmatprep.subr.bf16.mxu0 0
    %406 = vmatpush2.bf16.msra.mxu0 %v299
    %407 = vmatprep.subr.bf16.mxu0 0
    %408 = vmatpush2.bf16.msra.mxu0 %v296
    %409 = vmatprep.subr.bf16.mxu0 0
    %410 = vmatpush2.bf16.msra.mxu0 %v293
    %411 = vmatprep.subr.bf16.mxu0 0
    %412 = vmatpush2.bf16.msra.mxu0 %v290
    %413 = vmatprep.mubr.bf16.mxu0 %v338
    %414 = vmatmul.mubr.bf16.gmra.mxu0 %v77
    %v415 = vpop.f32.mrf.mxu0
    %v416 = vadd.f32 %v140, %v415
    %v417 = vpop.f32.mrf.mxu0
    %v418 = vpop.f32.mrf.mxu0
    %v419 = vpop.f32.mrf.mxu0
    %420 = vdwg.mxu0
    %s421 = sld [smem:[#allocation2]]
    %v422 = vand.u32 2147483647, %v375
    %v423 = vstv %s421
    %v424 = vsub.f32 %v422, %v423
    %v425 = vmax.f32 %v424, 0.0
    %vm426 = vcmp.gt.f32.partialorder %v375, 0.0
    %vm427 = vcmp.lt.f32.partialorder %v375, 0.0
    %v428 = vsel %vm427, -1.0, 0.0
    %v429 = vsel %vm426, 1.0, %v428
    %v430 = vmul.f32 %v429, %v425
    %v431 = vpack.c.bf16 %v430, %v430
    %v432 = vld [vmem:[#allocation9] sm:$0xf]
    %v433 = vld [vmem:[#allocation9 + $0x4] sm:$0xf]
    %v434 = vld [vmem:[#allocation9 + $0x8] sm:$0xf]
    %v435 = vld [vmem:[#allocation9 + $0xc] sm:$0xf]
    %v436 = vld [vmem:[#allocation9 + $0x10] sm:$0xf]
    %v437 = vld [vmem:[#allocation9 + $0x14] sm:$0xf]
    %v438 = vld [vmem:[#allocation9 + $0x18] sm:$0xf]
    %v439 = vld [vmem:[#allocation9 + $0x1c] sm:$0xf]
    %v440 = vld [vmem:[#allocation9 + $0x20] sm:$0xf]
    %v441 = vld [vmem:[#allocation9 + $0x24] sm:$0xf]
    %v442 = vld [vmem:[#allocation9 + $0x28] sm:$0xf]
    %v443 = vld [vmem:[#allocation9 + $0x2c] sm:$0xf]
    %v444 = vld [vmem:[#allocation9 + $0x30] sm:$0xf]
    %v445 = vld [vmem:[#allocation9 + $0x34] sm:$0xf]
    %v446 = vld [vmem:[#allocation9 + $0x38] sm:$0xf]
    %v447 = vld [vmem:[#allocation9 + $0x3c] sm:$0xf]
    %v464 = vunpack.c.l.b16 %v432
    %v465 = vunpack.c.l.b16 %v433
    %v466 = vunpack.c.l.b16 %v434
    %v467 = vunpack.c.l.b16 %v435
    %v468 = vunpack.c.l.b16 %v436
    %v469 = vunpack.c.l.b16 %v437
    %v470 = vunpack.c.l.b16 %v438
    %v471 = vunpack.c.l.b16 %v439
    %v472 = vunpack.c.l.b16 %v440
    %v473 = vunpack.c.l.b16 %v441
    %v474 = vunpack.c.l.b16 %v442
    %v475 = vunpack.c.l.b16 %v443
    %v476 = vunpack.c.l.b16 %v444
    %v477 = vunpack.c.l.b16 %v445
    %v478 = vunpack.c.l.b16 %v446
    %v479 = vunpack.c.l.b16 %v447
    %v480 = vpack.c.b16 %v465, %v464
    %v481 = vpack.c.b16 %v467, %v466
    %v482 = vpack.c.b16 %v469, %v468
    %v483 = vpack.c.b16 %v471, %v470
    %v484 = vpack.c.b16 %v473, %v472
    %v485 = vpack.c.b16 %v475, %v474
    %v486 = vpack.c.b16 %v477, %v476
    %v487 = vpack.c.b16 %v479, %v478
    %496 = vmatprep.subr.bf16.mxu0 0
    %497 = vmatpush1.bf16.msra.mxu0 %v487
    %498 = vmatprep.subr.bf16.mxu0 0
    %499 = vmatpush1.bf16.msra.mxu0 %v486
    %500 = vmatprep.subr.bf16.mxu0 0
    %501 = vmatpush1.bf16.msra.mxu0 %v485
    %502 = vmatprep.subr.bf16.mxu0 0
    %503 = vmatpush1.bf16.msra.mxu0 %v484
    %504 = vmatprep.subr.bf16.mxu0 0
    %505 = vmatpush1.bf16.msra.mxu0 %v483
    %506 = vmatprep.subr.bf16.mxu0 0
    %507 = vmatpush1.bf16.msra.mxu0 %v482
    %508 = vmatprep.subr.bf16.mxu0 0
    %509 = vmatpush1.bf16.msra.mxu0 %v481
    %510 = vmatprep.subr.bf16.mxu0 0
    %511 = vmatpush1.bf16.msra.mxu0 %v480
    %512 = vmatprep.subr.bf16.mxu0 0
    %513 = vmatpush2.bf16.msra.mxu0 0
    %514 = vmatprep.subr.bf16.mxu0 0
    %515 = vmatpush2.bf16.msra.mxu0 0
    %516 = vmatprep.subr.bf16.mxu0 0
    %517 = vmatpush2.bf16.msra.mxu0 0
    %518 = vmatprep.subr.bf16.mxu0 0
    %519 = vmatpush2.bf16.msra.mxu0 0
    %520 = vmatprep.subr.bf16.mxu0 0
    %521 = vmatpush2.bf16.msra.mxu0 0
    %522 = vmatprep.subr.bf16.mxu0 0
    %523 = vmatpush2.bf16.msra.mxu0 0
    %524 = vmatprep.subr.bf16.mxu0 0
    %525 = vmatpush2.bf16.msra.mxu0 0
    %526 = vmatprep.subr.bf16.mxu0 0
    %527 = vmatpush2.bf16.msra.mxu0 0
    %528 = vmatprep.mubr.bf16.mxu0 0
    %529 = vmatmul.mubr.bf16.gmra.mxu0 %v431
    %v530 = vpop.f32.mrf.mxu0
    %v531 = vadd.f32 0.0, %v530
    %v532 = vpop.f32.mrf.mxu0
    %v533 = vpop.f32.mrf.mxu0
    %v534 = vpop.f32.mrf.mxu0
    %535 = vdwg.mxu0
    %v536 = vadd.f32 %v377, %v531
    %v537 = vld [vmem:[%s5] sm:$0x1]
    %v539 = vlaneseq
    %v540 = vshrl.u32 %v539, 7
    %v541 = vsub.s32 0, %v540
    %v542 = vrot.slane %v537, %v541
    %v544 = vadd.f32 %v536, %v542
    %s545 = sld [smem:[#allocation2 + $0x1]]
    %v546 = vand.u32 2147483647, %v544
    %v547 = vstv %s545
    %v548 = vsub.f32 %v546, %v547
    %v549 = vmax.f32 %v548, 0.0
    %vm550 = vcmp.gt.f32.partialorder %v544, 0.0
    %vm551 = vcmp.lt.f32.partialorder %v544, 0.0
    %v552 = vsel %vm551, -1.0, 0.0
    %v553 = vsel %vm550, 1.0, %v552
    %v554 = vmul.f32 %v553, %v549
    %v555 = vpack.c.bf16 %v554, %v554
    %s556 = scalar_lea.vmem [#allocation9], 64
    %v557 = vld [vmem:[%s556] sm:$0xf]
    %v558 = vld [vmem:[%s556 + $0x4] sm:$0xf]
    %v559 = vld [vmem:[%s556 + $0x8] sm:$0xf]
    %v560 = vld [vmem:[%s556 + $0xc] sm:$0xf]
    %v561 = vld [vmem:[%s556 + $0x10] sm:$0xf]
    %v562 = vld [vmem:[%s556 + $0x14] sm:$0xf]
    %v563 = vld [vmem:[%s556 + $0x18] sm:$0xf]
    %v564 = vld [vmem:[%s556 + $0x1c] sm:$0xf]
    %v565 = vld [vmem:[%s556 + $0x20] sm:$0xf]
    %v566 = vld [vmem:[%s556 + $0x24] sm:$0xf]
    %v567 = vld [vmem:[%s556 + $0x28] sm:$0xf]
    %v568 = vld [vmem:[%s556 + $0x2c] sm:$0xf]
    %v569 = vld [vmem:[%s556 + $0x30] sm:$0xf]
    %v570 = vld [vmem:[%s556 + $0x34] sm:$0xf]
    %v571 = vld [vmem:[%s556 + $0x38] sm:$0xf]
    %v572 = vld [vmem:[%s556 + $0x3c] sm:$0xf]
    %v589 = vunpack.c.l.b16 %v557
    %v590 = vunpack.c.l.b16 %v558
    %v591 = vunpack.c.l.b16 %v559
    %v592 = vunpack.c.l.b16 %v560
    %v593 = vunpack.c.l.b16 %v561
    %v594 = vunpack.c.l.b16 %v562
    %v595 = vunpack.c.l.b16 %v563
    %v596 = vunpack.c.l.b16 %v564
    %v597 = vunpack.c.l.b16 %v565
    %v598 = vunpack.c.l.b16 %v566
    %v599 = vunpack.c.l.b16 %v567
    %v600 = vunpack.c.l.b16 %v568
    %v601 = vunpack.c.l.b16 %v569
    %v602 = vunpack.c.l.b16 %v570
    %v603 = vunpack.c.l.b16 %v571
    %v604 = vunpack.c.l.b16 %v572
    %v605 = vpack.c.b16 %v590, %v589
    %v606 = vpack.c.b16 %v592, %v591
    %v607 = vpack.c.b16 %v594, %v593
    %v608 = vpack.c.b16 %v596, %v595
    %v609 = vpack.c.b16 %v598, %v597
    %v610 = vpack.c.b16 %v600, %v599
    %v611 = vpack.c.b16 %v602, %v601
    %v612 = vpack.c.b16 %v604, %v603
    %621 = vmatprep.subr.bf16.mxu0 0
    %622 = vmatpush1.bf16.msra.mxu0 %v612
    %623 = vmatprep.subr.bf16.mxu0 0
    %624 = vmatpush1.bf16.msra.mxu0 %v611
    %625 = vmatprep.subr.bf16.mxu0 0
    %626 = vmatpush1.bf16.msra.mxu0 %v610
    %627 = vmatprep.subr.bf16.mxu0 0
    %628 = vmatpush1.bf16.msra.mxu0 %v609
    %629 = vmatprep.subr.bf16.mxu0 0
    %630 = vmatpush1.bf16.msra.mxu0 %v608
    %631 = vmatprep.subr.bf16.mxu0 0
    %632 = vmatpush1.bf16.msra.mxu0 %v607
    %633 = vmatprep.subr.bf16.mxu0 0
    %634 = vmatpush1.bf16.msra.mxu0 %v606
    %635 = vmatprep.subr.bf16.mxu0 0
    %636 = vmatpush1.bf16.msra.mxu0 %v605
    %637 = vmatprep.subr.bf16.mxu0 0
    %638 = vmatpush2.bf16.msra.mxu0 0
    %639 = vmatprep.subr.bf16.mxu0 0
    %640 = vmatpush2.bf16.msra.mxu0 0
    %641 = vmatprep.subr.bf16.mxu0 0
    %642 = vmatpush2.bf16.msra.mxu0 0
    %643 = vmatprep.subr.bf16.mxu0 0
    %644 = vmatpush2.bf16.msra.mxu0 0
    %645 = vmatprep.subr.bf16.mxu0 0
    %646 = vmatpush2.bf16.msra.mxu0 0
    %647 = vmatprep.subr.bf16.mxu0 0
    %648 = vmatpush2.bf16.msra.mxu0 0
    %649 = vmatprep.subr.bf16.mxu0 0
    %650 = vmatpush2.bf16.msra.mxu0 0
    %651 = vmatprep.subr.bf16.mxu0 0
    %652 = vmatpush2.bf16.msra.mxu0 0
    %653 = vmatprep.mubr.bf16.mxu0 0
    %654 = vmatmul.mubr.bf16.gmra.mxu0 %v555
    %v655 = vpop.f32.mrf.mxu0
    %v656 = vadd.f32 0.0, %v655
    %v657 = vpop.f32.mrf.mxu0
    %v658 = vpop.f32.mrf.mxu0
    %v659 = vpop.f32.mrf.mxu0
    %660 = vdwg.mxu0
    %v661 = vadd.f32 %v416, %v656
    %s662 = scalar_lea.vmem %s5, 1
    %v663 = vld [vmem:[%s662] sm:$0x1]
    %v665 = vlaneseq
    %v666 = vshrl.u32 %v665, 7
    %v667 = vsub.s32 0, %v666
    %v668 = vrot.slane %v663, %v667
    %v670 = vadd.f32 %v661, %v668
    %s671 = sld [smem:[#allocation2 + $0x2]]
    %v672 = vand.u32 2147483647, %v670
    %v673 = vstv %s671
    %v674 = vsub.f32 %v672, %v673
    %v675 = vmax.f32 %v674, 0.0
    %vm676 = vcmp.gt.f32.partialorder %v670, 0.0
    %vm677 = vcmp.lt.f32.partialorder %v670, 0.0
    %v678 = vsel %vm677, -1.0, 0.0
    %v679 = vsel %vm676, 1.0, %v678
    %v680 = vmul.f32 %v679, %v675
    %681 = vst [vmem:[#allocation10] sm:$0xff] %v680
    // Predicated region
    $region42: #{tpu_custom_call.1} parent=1 // pred_check
      _
    $region43: #{tpu_custom_call.1} parent=1 // pred_check_branch
      %683 = sbr.rel (0) target = $region45
    $region44: #{tpu_custom_call.1} parent=1 // pred_region
      %s685 = ssub.s32 128, 128
      %686 = vsyncadd [#allocation4], %s685
      %s688 = sshll.u32 [#allocation10], 4
      %s689 = int_to_ptr.vmem [resolvable:$true] %s688
      %691 = dma.vmem_to_hbm [thread:$0]  %s689, 128, %s6, [#allocation4]
    $region45: #{tpu_custom_call.1} parent=1 // pred_fallthru
      _
    // Predicated region
    $region46: #{tpu_custom_call.1} parent=1 // pred_check
      _
    $region47: #{tpu_custom_call.1} parent=1 // pred_check_branch
      %693 = sbr.rel (0) target = $region49
    $region48: #{tpu_custom_call.1} parent=1 // pred_region
      %694 = dma.done [#allocation4], 128
    $region49: #{tpu_custom_call.1} parent=1 // pred_fallthru
      _
    %695 = vsyncpa [#allocation3], 1
    %696 = vsyncpa [#allocation8], 1
    %697 = vsyncpa [#allocation4], 1
    %698 = vsyncpa [#allocation5], 1

</llo_original>
